<compile_context>
chip_gen: v7x
topology: tpu7x:2x2x1
jax: 0.10.0
libtpu: 0.0.40
codegen_flags: <defaults>
</compile_context>

<pallas_src>
import numpy as np
import jax
import jax.numpy as jnp
from jax.experimental import pallas as pl
from jax.experimental.pallas import tpu as pltpu


# ----------------------------------------------------------------------------------
# Pallas kernel 1: one matmul -> (features | obj_embed | pos_embed) lane-dense slab
# ----------------------------------------------------------------------------------
def fused_obj_pos_features(features, x_comb, w_comb, b_comb, emb_dim):
    """features (N, 2048); x_comb = [distribution | boxes4] (N, K); w_comb (K, emb+pos).

    Output (N, 2048 + emb + pos):  [features | dist @ W_emb | ReLU(affine(boxes4))].
    """
    n, fdim = features.shape
    k = x_comb.shape[1]
    d = w_comb.shape[1]
    rb = n if n <= 256 else 256          # row tile (full extent for small N, else 256)
    grid = (pl.cdiv(n, rb),)

    def kernel(f_ref, x_ref, w_ref, b_ref, o_ref):
        acc = jnp.dot(x_ref[...], w_ref[...],
                      preferred_element_type=jnp.float32) + b_ref[...]
        lane = jax.lax.broadcasted_iota(jnp.int32, acc.shape, 1)
        # ReLU only on the pos_embed lanes (>= emb_dim); obj_embed lanes pass through.
        # TODO(synk): reorder to [pos|obj] (128-aligned boundary) to elide the per-lane select.
        slab = jnp.where(lane >= emb_dim, jnp.maximum(acc, 0.0), acc)
        o_ref[:, :fdim] = f_ref[...]               # fused concat: features block pass-through
        o_ref[:, fdim:] = slab

    return pl.pallas_call(
        kernel,
        out_shape=jax.ShapeDtypeStruct((n, fdim + d), jnp.float32),
        grid=grid,
        in_specs=[pl.BlockSpec((rb, fdim), lambda i: (i, 0)),
                  pl.BlockSpec((rb, k), lambda i: (i, 0)),
                  pl.BlockSpec((k, d), lambda i: (0, 0)),
                  pl.BlockSpec((1, d), lambda i: (0, 0))],
        out_specs=pl.BlockSpec((rb, fdim + d), lambda i: (i, 0)),
        compiler_params=pltpu.CompilerParams(dimension_semantics=("parallel",)),
    )(features, x_comb, w_comb, b_comb)


# ----------------------------------------------------------------------------------
# Pallas kernel 2: ROIAlign as (C, HW) @ (HW, PACK*64) per packed group of same-frame pairs
# ----------------------------------------------------------------------------------
def roi_align_pallas(weights_bf16, fmaps_bf16, group_frame_i32):
    """weights (G, HW_pad, PACK*64) bf16; fmaps (F, C, HW_pad) bf16; group_frame (G,) i32.

    Returns (G, C, PACK*64) f32 pooled features (channel-major, pairs packed on lanes)."""
    g, hw, mpk = weights_bf16.shape
    f, c, hw2 = fmaps_bf16.shape
    assert hw == hw2

    def kernel(gf_ref, w_ref, f_ref, o_ref):
        # (C, HW) @ (HW, PACK*64) -> (C, PACK*64), f32 accumulation on the MXU.
        o_ref[0] = jnp.dot(f_ref[0], w_ref[0], preferred_element_type=jnp.float32)

    grid_spec = pltpu.PrefetchScalarGridSpec(
        num_scalar_prefetch=1,
        grid=(g,),
        in_specs=[pl.BlockSpec((1, hw, mpk), lambda i, gf: (i, 0, 0)),
                  # frame index is a prefetched scalar: same-frame groups reuse the resident
                  # (C, HW_pad) block, no re-DMA.
                  # TODO(synk): pipeline_mode=pl.Buffered(1) here on v7x to reclaim the dead
                  #             second fmap buffer (frame index rarely changes).
                  pl.BlockSpec((1, c, hw), lambda i, gf: (gf[i], 0, 0))],
        out_specs=pl.BlockSpec((1, c, mpk), lambda i, gf: (i, 0, 0)),
    )
    # VMEM budget from the actual double-buffered blocks, capped at 48 MiB (v7x has 64 MiB).
    buf_bytes = 2 * (hw * mpk * 2) + 2 * (c * hw * 2) + 2 * (c * mpk * 4)
    vmem_limit = min(48 << 20, max(buf_bytes + (4 << 20), 16 << 20))
    # TODO(synk): emit bf16 output if downstream tolerates it (halves writeback).
    # TODO(synk): for v5e, crop the contraction to a per-union-box window (K_win << H*W).
    return pl.pallas_call(
        kernel,
        out_shape=jax.ShapeDtypeStruct((g, c, mpk), jnp.float32),
        grid_spec=grid_spec,
        compiler_params=pltpu.CompilerParams(
            dimension_semantics=("parallel",),     # groups are independent (distinct out blocks)
            vmem_limit_bytes=vmem_limit),
    )(group_frame_i32, weights_bf16, fmaps_bf16)


# ----------------------------------------------------------------------------------
# Host helpers (data prep for the ROIAlign matmul + mask rasterization)
# ----------------------------------------------------------------------------------
def _default_pack():
    """Pairs packed per grid step: 4 on v6e/v7x (256-wide MXU), 2 on v5e (128-wide)."""
    try:
        kind = jax.devices()[0].device_kind.lower()
        if "v5 lite" in kind or "v5e" in kind or "v5litepod" in kind:
            return 2
    except Exception:
        pass
    return 4


def roi_align_weights_np(rois, H, W, spatial_scale, out_size=7, sampling_ratio=0,
                         hw_pad=None, m_pad=64):
    """Bilinear interpolation weights of ROIAlign (aligned=False, adaptive sampling).

    Emits (P, HW_pad, m_pad) with weights[p, pixel, bin] so the kernel can compute
    (C, HW) @ (HW, bins) directly (channel-major output, no downstream transpose)."""
    # TODO(synk): legacy ROIAlign variants differ on the +/-0.5 alignment offset.
    P = rois.shape[0]
    HWp = hw_pad if hw_pad is not None else H * W
    M = m_pad
    weights = np.zeros((P, HWp, M), dtype=np.float32)
    for p in range(P):
        x1, y1, x2, y2 = rois[p] * spatial_scale
        roi_w = max(x2 - x1, 1.0)
        roi_h = max(y2 - y1, 1.0)
        bin_w = roi_w / out_size
        bin_h = roi_h / out_size
        sr_h = sampling_ratio if sampling_ratio > 0 else int(np.ceil(roi_h / out_size))
        sr_w = sampling_ratio if sampling_ratio > 0 else int(np.ceil(roi_w / out_size))
        inv_count = 1.0 / float(max(sr_h * sr_w, 1))

        oy = np.arange(out_size, dtype=np.float64)
        ox = np.arange(out_size, dtype=np.float64)
        iy = np.arange(sr_h, dtype=np.float64)
        ix = np.arange(sr_w, dtype=np.float64)
        y = y1 + oy[:, None] * bin_h + (iy[None, :] + 0.5) * bin_h / sr_h   # (7, sr_h)
        x = x1 + ox[:, None] * bin_w + (ix[None, :] + 0.5) * bin_w / sr_w   # (7, sr_w)

        yy = np.broadcast_to(y[:, None, :, None], (out_size, out_size, sr_h, sr_w))
        xx = np.broadcast_to(x[None, :, None, :], (out_size, out_size, sr_h, sr_w))
        valid = (~((yy < -1.0) | (yy > H) | (xx < -1.0) | (xx > W))).astype(np.float64)

        ycl = np.clip(yy, 0.0, H - 1.0)
        xcl = np.clip(xx, 0.0, W - 1.0)
        y_lo = np.floor(ycl).astype(np.int64)
        x_lo = np.floor(xcl).astype(np.int64)
        y_hi = np.minimum(y_lo + 1, H - 1)
        x_hi = np.minimum(x_lo + 1, W - 1)
        ly = ycl - y_lo
        lx = xcl - x_lo
        hy = 1.0 - ly
        hx = 1.0 - lx

        obin = np.arange(out_size)[:, None] * out_size + np.arange(out_size)[None, :]
        obin = np.broadcast_to(obin[:, :, None, None], yy.shape)
        wmat = weights[p]
        for gy, gx, wgt in ((y_lo, x_lo, hy * hx), (y_lo, x_hi, hy * lx),
                            (y_hi, x_lo, ly * hx), (y_hi, x_hi, ly * lx)):
            np.add.at(wmat, ((gy * W + gx).ravel(), obin.ravel()),
                      (wgt * inv_count * valid).ravel().astype(np.float32))
    return weights


def pack_pairs_by_frame(im_idx_int, pack):
    """Group frame-sorted pairs into groups of <= pack same-frame pairs.

    Returns (group_frame[G] i32, pair_flat[P] flat slot index g*pack+s, G)."""
    P = im_idx_int.shape[0]
    group_frame = []
    pair_flat = np.zeros(P, dtype=np.int64)
    g = 0
    i = 0
    while i < P:
        f = int(im_idx_int[i])
        j = i
        while j < P and int(im_idx_int[j]) == f:
            j += 1
        n_pairs = j - i
        n_groups = -(-n_pairs // pack)
        for k in range(n_pairs):
            pair_flat[i + k] = (g + k // pack) * pack + (k % pack)
        group_frame.extend([f] * n_groups)
        g += n_groups
        i = j
    return np.asarray(group_frame, dtype=np.int32), pair_flat, g


def draw_union_boxes_np(pair_rois, pooling_size=27):
    """Rasterize each box of a pair onto a pooling_size^2 grid of its union box."""
    # TODO(synk): approximates the original C extension draw_union_boxes rasterization.
    P = pair_rois.shape[0]
    masks = np.zeros((P, 2, pooling_size, pooling_size), dtype=np.float32)
    for p in range(P):
        b1, b2 = pair_rois[p, :4], pair_rois[p, 4:]
        ux1, uy1 = min(b1[0], b2[0]), min(b1[1], b2[1])
        ux2, uy2 = max(b1[2], b2[2]), max(b1[3], b2[3])
        uw, uh = max(ux2 - ux1, 1e-3), max(uy2 - uy1, 1e-3)
        for c, bx in enumerate((b1, b2)):
            x1 = int(np.floor((bx[0] - ux1) / uw * (pooling_size - 1)))
            y1 = int(np.floor((bx[1] - uy1) / uh * (pooling_size - 1)))
            x2 = int(np.ceil((bx[2] - ux1) / uw * (pooling_size - 1)))
            y2 = int(np.ceil((bx[3] - uy1) / uh * (pooling_size - 1)))
            masks[p, c, y1:y2 + 1, x1:x2 + 1] = 1.0
    return masks


# ----------------------------------------------------------------------------------
# ROI_Feature forward
# ----------------------------------------------------------------------------------
M_PAIR = 64   # per-pair pooled bins padded 49 -> 64 (pack*64 is a 128 lane multiple)


def roi_feature_forward(entry, params):
    boxes = np.asarray(entry['boxes'], dtype=np.float32)           # (N, 5)
    dist_np = np.asarray(entry['distribution'], dtype=np.float32)  # (N, num_cls - 1)
    box_idx = boxes[:, 0].astype(np.int64)
    b = len(np.unique(box_idx))
    N = boxes.shape[0]

    # ---- Pallas hot path 1: one fused matmul + concat for [features|obj_embed|pos_embed] ----
    # center_size + eval-mode BatchNorm folded into the Linear at init; Dropout(0.1) identity.
    x_comb = np.concatenate([dist_np, boxes[:, 1:5]], axis=1).astype(np.float32)
    obj_features = fused_obj_pos_features(jnp.asarray(entry['features']),
                                          jnp.asarray(x_comb),
                                          params['w_comb'], params['b_comb'],
                                          params['emb_dim'])        # (N, 2048+200+128)

    # ---- data-dependent bookkeeping (host, variable-length) ----
    global_idx = np.arange(N)
    HUMAN_IDX = np.zeros((b, 1), dtype=np.int64)
    for i in range(b):
        m = box_idx == i
        local_human_idx = int(np.argmax(dist_np[m, 0]))
        HUMAN_IDX[i] = global_idx[m][local_human_idx]

    pred_labels = np.asarray(entry['pred_labels']).copy()
    pred_scores = np.asarray(entry['pred_scores'], dtype=np.float32).copy()
    h_flat = HUMAN_IDX[:, 0]
    pred_labels[h_flat] = 0
    pred_scores[h_flat] = dist_np[h_flat, 0]

    im_idx_list, pair_list = [], []
    for j in range(b):                      # frame-major -> pairs are frame-sorted
        h = int(HUMAN_IDX[j, 0])
        m = box_idx == j
        for k in global_idx[m][pred_labels[m] != 0]:
            im_idx_list.append(j)
            pair_list.append([h, int(k)])
    pair = np.asarray(pair_list, dtype=np.int64).reshape(-1, 2)
    im_idx = np.asarray(im_idx_list, dtype=np.float32)
    im_idx_int = np.asarray(im_idx_list, dtype=np.int32)
    P = pair.shape[0]

    im_info = float(entry['im_info'])
    fmaps = np.asarray(entry['fmaps'], dtype=np.float32)            # NCHW
    F, C, H, W = fmaps.shape
    HW = H * W
    HW_pad = ((HW + 127) // 128) * 128      # pad contraction dim to a lane multiple

    if P > 0:
        # ---- union boxes in image-scale coordinates ----
        sb = boxes[:, 1:5] * im_info
        union_boxes = np.concatenate(
            [im_idx[:, None],
             np.minimum(sb[pair[:, 0], 0:2], sb[pair[:, 1], 0:2]),
             np.maximum(sb[pair[:, 0], 2:4], sb[pair[:, 1], 2:4])],
            axis=1).astype(np.float32)

        # ---- Pallas hot path 2: ROIAlign((7,7), 1/16, 0) as packed per-group matmul ----
        PACK = _default_pack()
        group_frame, pair_flat, G = pack_pairs_by_frame(im_idx_int, PACK)

        # per-pair bilinear weights (HW_pad, 64), then pack PACK same-frame pairs on lanes
        roi_w = roi_align_weights_np(union_boxes[:, 1:5], H, W,
                                     spatial_scale=1.0 / 16.0, out_size=7,
                                     sampling_ratio=0, hw_pad=HW_pad, m_pad=M_PAIR)
        w_packed = np.zeros((G * PACK, HW_pad, M_PAIR), dtype=np.float32)
        w_packed[pair_flat] = roi_w
        w_packed = np.ascontiguousarray(
            w_packed.reshape(G, PACK, HW_pad, M_PAIR).transpose(0, 2, 1, 3)
        ).reshape(G, HW_pad, PACK * M_PAIR).astype(jnp.bfloat16)    # host bf16 cast

        # fmaps stay channel-major (native NCHW flatten), zero-pad HW, host bf16 cast
        fm = fmaps.reshape(F, C, HW)
        if HW_pad > HW:
            fm = np.pad(fm, ((0, 0), (0, 0), (0, HW_pad - HW)))
        fm = np.ascontiguousarray(fm).astype(jnp.bfloat16)

        pooled = roi_align_pallas(jnp.asarray(w_packed), jnp.asarray(fm),
                                  jnp.asarray(group_frame))          # (G, C, PACK*64) f32

        # unpack: already channel-major, so only a non-lane axis swap + gather (no cross-lane
        # transpose like the old (P,49,C)->(P,C,49)).
        pooled = pooled.reshape(G, C, PACK, M_PAIR)
        pooled = jnp.swapaxes(pooled, 1, 2).reshape(G * PACK, C, M_PAIR)
        union_feat = pooled[jnp.asarray(pair_flat), :, :49].reshape(P, C, 7, 7)
    else:
        union_boxes = np.zeros((0, 5), dtype=np.float32)
        union_feat = jnp.zeros((0, C, 7, 7), dtype=jnp.float32)

    # ---- spatial masks ----
    pair_rois = np.concatenate([boxes[pair[:, 0], 1:5], boxes[pair[:, 1], 1:5]], axis=1)
    spatial_masks = jnp.asarray(draw_union_boxes_np(pair_rois, 27) - 0.5)

    out = dict(entry)
    out['obj_features'] = obj_features       # computed (and discarded) by the original forward
    out['pred_labels'] = jnp.asarray(pred_labels)
    out['pred_scores'] = jnp.asarray(pred_scores)
    out['pair_idx'] = jnp.asarray(pair)
    out['im_idx'] = jnp.asarray(im_idx)
    out['human_idx'] = jnp.asarray(HUMAN_IDX)
    out['boxes'] = jnp.asarray(boxes)        # scaled then unscaled in original: net unchanged
    out['union_feat'] = union_feat
    out['union_box'] = jnp.asarray(union_boxes)
    out['spatial_masks'] = spatial_masks
    return out


# ----------------------------------------------------------------------------------
# Deterministic parameter init (synthetic weights; glove load replaced by random).
# center_size + BatchNorm (eval mode) are folded into the Linear here, and the obj
# embedding + pos Linear are combined into one block-diagonal weight matrix so
# kernel 1 is a single matmul.
# ----------------------------------------------------------------------------------
def init_params(key, num_obj_classes, emb_dim=200, pos_dim=128):
    k1, k2, k3, k4, k5, k6 = jax.random.split(key, 6)
    emb = 0.1 * jax.random.normal(k1, (num_obj_classes - 1, emb_dim), dtype=jnp.float32)
    gamma = 1.0 + 0.1 * jax.random.normal(k2, (4,), dtype=jnp.float32)
    beta = 0.1 * jax.random.normal(k3, (4,), dtype=jnp.float32)
    run_mean = 0.05 * jax.random.normal(k4, (4,), dtype=jnp.float32)
    run_var = 0.5 + jax.random.uniform(k5, (4,), dtype=jnp.float32)
    lin_w = jax.random.normal(k6, (4, pos_dim), dtype=jnp.float32) / jnp.sqrt(4.0)
    lin_b = jnp.zeros((pos_dim,), dtype=jnp.float32)

    # eval-mode BN as per-channel scale/bias (eps = 1e-5, as in nn.BatchNorm1d default)
    scale = np.asarray(gamma / jnp.sqrt(run_var + 1e-5))
    bias = np.asarray(beta) - np.asarray(run_mean) * scale

    # center_size is affine: (x1,y1,x2,y2) -> (cx,cy,w,h) = boxes4 @ M + c
    M = np.array([[0.5, 0.0, -1.0, 0.0],
                  [0.0, 0.5, 0.0, -1.0],
                  [0.5, 0.0, 1.0, 0.0],
                  [0.0, 0.5, 0.0, 1.0]], dtype=np.float32)
    c = np.array([0.5, 0.5, 1.0, 1.0], dtype=np.float32)

    lin_w_np = np.asarray(lin_w)
    lin_b_np = np.asarray(lin_b)
    w_eff = (M * scale[None, :]) @ lin_w_np                    # (4, pos_dim)
    b_eff = (c * scale + bias) @ lin_w_np + lin_b_np           # (pos_dim,)

    k_in = (num_obj_classes - 1) + 4
    d_out = emb_dim + pos_dim
    w_comb = np.zeros((k_in, d_out), dtype=np.float32)
    w_comb[:num_obj_classes - 1, :emb_dim] = np.asarray(emb)   # distribution -> obj_embed
    w_comb[num_obj_classes - 1:, emb_dim:] = w_eff             # boxes4 -> pos_embed
    b_comb = np.zeros((1, d_out), dtype=np.float32)
    b_comb[0, emb_dim:] = b_eff

    return {'w_comb': jnp.asarray(w_comb),
            'b_comb': jnp.asarray(b_comb),
            'emb_dim': emb_dim}
    # NOTE: decoder_lin is declared in __init__ but never used in forward -> not built.


if __name__ == "__main__":
    key = jax.random.PRNGKey(0)
    kp, kb, kw, kd, kf, km, kl = jax.random.split(key, 7)

    num_obj_classes = 11          # incl. background; embedding table has num-1 rows
    N = 8                         # detections, 4 per frame
    frames = 2
    Cf, Hf, Wf = 4, 16, 16        # small feature map (NCHW), spatial_scale = 1/16

    params = init_params(kp, num_obj_classes)

    frame_idx = np.repeat(np.arange(frames), N // frames).astype(np.float32)
    xy1 = jax.random.uniform(kb, (N, 2), minval=0.0, maxval=60.0)
    wh = jax.random.uniform(kw, (N, 2), minval=10.0, maxval=60.0)
    boxes = np.concatenate([frame_idx[:, None],
                            np.asarray(xy1), np.asarray(xy1 + wh)], axis=1).astype(np.float32)

    distribution = jax.nn.softmax(jax.random.normal(kd, (N, num_obj_classes - 1)), axis=-1)
    features = jax.random.normal(kf, (N, 2048), dtype=jnp.float32)
    fmaps = jax.random.normal(km, (frames, Cf, Hf, Wf), dtype=jnp.float32)
    pred_labels = jax.random.randint(kl, (N,), 1, num_obj_classes - 1)
    pred_scores = jnp.max(distribution, axis=-1)

    entry = {
        'boxes': boxes,
        'distribution': distribution,
        'features': features,
        'pred_labels': pred_labels,
        'pred_scores': pred_scores,
        'im_info': 2.0,
        'fmaps': fmaps,
    }

    out = roi_feature_forward(entry, params)
    jax.block_until_ready(out['obj_features'])
    jax.block_until_ready(out['union_feat'])
    jax.block_until_ready(out['spatial_masks'])

    assert out['obj_features'].shape == (N, 2048 + 200 + 128)
    assert out['union_feat'].shape == (out['pair_idx'].shape[0], Cf, 7, 7)
    assert out['spatial_masks'].shape == (out['pair_idx'].shape[0], 2, 27, 27)
    print("KERNEL_OK")
</pallas_src>

<mosaic_0001>
module attributes {stable_mosaic.version = 11 : i64} {
  func.func @kernel(%arg0: i32, %arg1: memref<8x2048xf32, #tpu.memory_space<vmem>>, %arg2: memref<8x14xf32, #tpu.memory_space<vmem>>, %arg3: memref<14x328xf32, #tpu.memory_space<vmem>>, %arg4: memref<1x328xf32, #tpu.memory_space<vmem>>, %arg5: memref<8x2376xf32, #tpu.memory_space<vmem>>) attributes {dimension_semantics = [#tpu.dimension_semantics<parallel>], iteration_bounds = array<i64: 1>, scalar_prefetch = 0 : i64, scratch_operands = 0 : i64, tpu.core_type = #tpu.core_type<tc>, window_params = [{transform_indices = @transform_0, window_bounds = array<i64: 8, 2048>}, {transform_indices = @transform_1, window_bounds = array<i64: 8, 14>}, {pipeline_mode = #tpu.pipeline_mode<synchronous>, transform_indices = @transform_2, window_bounds = array<i64: 14, 328>}, {pipeline_mode = #tpu.pipeline_mode<synchronous>, transform_indices = @transform_3, window_bounds = array<i64: 1, 328>}, {transform_indices = @transform_4, window_bounds = array<i64: 8, 2376>}]} {
    %c0 = arith.constant 0 : index
    %c0_0 = arith.constant 0 : index
    %0 = vector.load %arg2[%c0, %c0_0] : memref<8x14xf32, #tpu.memory_space<vmem>>, vector<8x14xf32>
    %c0_1 = arith.constant 0 : index
    %c0_2 = arith.constant 0 : index
    %1 = vector.load %arg3[%c0_1, %c0_2] : memref<14x328xf32, #tpu.memory_space<vmem>>, vector<14x328xf32>
    %cst = arith.constant dense<0.000000e+00> : vector<8x328xf32>
    %2 = tpu.matmul %0, %1, %cst {dimension_numbers = #tpu.dot_dimension_numbers<[1], [0], [0], [1], [0, 0, 1, 1], [], []>} : vector<8x14xf32>, vector<14x328xf32>, vector<8x328xf32> -> vector<8x328xf32>
    %c0_3 = arith.constant 0 : index
    %c0_4 = arith.constant 0 : index
    %3 = vector.load %arg4[%c0_3, %c0_4] : memref<1x328xf32, #tpu.memory_space<vmem>>, vector<1x328xf32>
    %4 = vector.broadcast %3 : vector<1x328xf32> to vector<8x328xf32>
    %5 = arith.addf %2, %4 : vector<8x328xf32>
    %6 = tpu.iota {dimensions = array<i32: 1>} : vector<8x328xi32>
    %c200_i32 = arith.constant 200 : i32
    %7 = vector.broadcast %c200_i32 : i32 to vector<8x328xi32>
    %8 = arith.cmpi sge, %6, %7 : vector<8x328xi32>
    %cst_5 = arith.constant 0.000000e+00 : f32
    %9 = vector.broadcast %cst_5 : f32 to vector<8x328xf32>
    %10 = arith.maximumf %5, %9 : vector<8x328xf32>
    %11 = arith.select %8, %10, %5 : vector<8x328xi1>, vector<8x328xf32>
    %c0_6 = arith.constant 0 : index
    %c0_7 = arith.constant 0 : index
    %12 = vector.load %arg1[%c0_6, %c0_7] : memref<8x2048xf32, #tpu.memory_space<vmem>>, vector<8x2048xf32>
    %c0_8 = arith.constant 0 : index
    %c0_9 = arith.constant 0 : index
    %13 = vector.load %arg5[%c0_8, %c0_9] : memref<8x2376xf32, #tpu.memory_space<vmem>>, vector<8x2048xf32>
    tpu.vector_store %arg5[%c0_8, %c0_9], %12 {strides = array<i32>} : memref<8x2376xf32, #tpu.memory_space<vmem>>, vector<8x2048xf32>,
    %c0_10 = arith.constant 0 : index
    %c2048 = arith.constant 2048 : index
    %14 = vector.load %arg5[%c0_10, %c2048] : memref<8x2376xf32, #tpu.memory_space<vmem>>, vector<8x328xf32>
    tpu.vector_store %arg5[%c0_10, %c2048], %11 {strides = array<i32>} : memref<8x2376xf32, #tpu.memory_space<vmem>>, vector<8x328xf32>,
    return
  }
  func.func @transform_0(%arg0: i32) -> (i32, i32) {
    %c0_i32 = arith.constant 0 : i32
    %c0_i32_0 = arith.constant 0 : i32
    return %arg0, %c0_i32 : i32, i32
  }
  func.func @transform_1(%arg0: i32) -> (i32, i32) {
    %c0_i32 = arith.constant 0 : i32
    %c0_i32_0 = arith.constant 0 : i32
    return %arg0, %c0_i32 : i32, i32
  }
  func.func @transform_2(%arg0: i32) -> (i32, i32) {
    %c0_i32 = arith.constant 0 : i32
    %c0_i32_0 = arith.constant 0 : i32
    %c0_i32_1 = arith.constant 0 : i32
    return %c0_i32, %c0_i32_0 : i32, i32
  }
  func.func @transform_3(%arg0: i32) -> (i32, i32) {
    %c0_i32 = arith.constant 0 : i32
    %c0_i32_0 = arith.constant 0 : i32
    %c0_i32_1 = arith.constant 0 : i32
    return %c0_i32, %c0_i32_0 : i32, i32
  }
  func.func @transform_4(%arg0: i32) -> (i32, i32) {
    %c0_i32 = arith.constant 0 : i32
    %c0_i32_0 = arith.constant 0 : i32
    return %arg0, %c0_i32 : i32, i32
  }
}

</mosaic_0001>

<llo_original>
// kernel: tpu_custom_call.1
$region0: #{tpu_custom_call.1}
  #allocation0 [shape = 'u32[]', space=smem, size = 0x4, offset = 0x4, fixed_abs, tag = 'smem constant byte address 0x4 - core index']
  #allocation1 [shape = 'u32[144,128]{1,0:T(1,128)}', space=vmem, size = 0x12000, scoped, tag = 'internal scratch']
  %s0 = inlined_call_operand.hbm [shape: f32[8,2048], index: 0, kind: input, shape index: {}]
  %s1 = inlined_call_operand.hbm [shape: f32[8,14], index: 1, kind: input, shape index: {}]
  %s2 = inlined_call_operand.hbm [shape: f32[14,328], index: 2, kind: input, shape index: {}]
  %s3 = inlined_call_operand.vmem [shape: f32[1,328], index: 3, kind: input, shape index: {}]
  %s4 = inlined_call_operand.hbm [shape: f32[8,2376], index: 4, kind: output, shape index: {}]
  %s5 = sld [smem:[#allocation0]]
  $region38: #{tpu_custom_call.1} parent=0
    _
  %s7 = ssub.s32 1, %s5
  %s8 = scalar_select 0, %s7, %s5
  $region1: #{tpu_custom_call.1} parent=0
    #allocation2 [shape = 'u8[65536]{0}', space=vmem, size = 0x10000, scoped, tag = 'input window, operand 0, single buffered']
    #allocation3 [shape = 's32[1]{0}', space=sflag, size = 0x4, scoped, tag = 'scoped memory for tpu_custom_call.1']
    #allocation4 [shape = 's32[1]{0}', space=sflag, size = 0x4, scoped, tag = 'scoped memory for tpu_custom_call.1']
    #allocation5 [shape = 'u8[4096]{0}', space=vmem, size = 0x1000, scoped, tag = 'input window, operand 1, single buffered']
    #allocation6 [shape = 's32[1]{0}', space=sflag, size = 0x4, scoped, tag = 'scoped memory for tpu_custom_call.1']
    #allocation7 [shape = 'u8[24576]{0}', space=vmem, size = 0x6000, scoped, tag = 'input window, operand 2, single buffered']
    #allocation8 [shape = 'u8[77824]{0}', space=vmem, size = 0x13000, scoped, tag = 'output window, operand 0, single buffered']
    %9 = vsyncpa [#allocation3], 0
    %10 = vsyncpa [#allocation6], 0
    %11 = vsyncpa [#allocation4], 0
    // Predicated region
    $region2: #{tpu_custom_call.1} parent=1 // pred_check
      _
    $region3: #{tpu_custom_call.1} parent=1 // pred_check_branch
      %13 = sbr.rel (0) target = $region5
    $region4: #{tpu_custom_call.1} parent=1 // pred_region
      %s15 = ssub.s32 2048, 2048
      %16 = vsyncadd [#allocation3], %s15
      %s18 = sshll.u32 [#allocation2], 4
      %s19 = int_to_ptr.vmem [resolvable:$true] %s18
      %21 = dma.hbm_to_vmem [thread:$0]  %s0, 2048, %s19, [#allocation3]
    $region5: #{tpu_custom_call.1} parent=1 // pred_fallthru
      _
    // Predicated region
    $region6: #{tpu_custom_call.1} parent=1 // pred_check
      _
    $region7: #{tpu_custom_call.1} parent=1 // pred_check_branch
      %23 = sbr.rel (0) target = $region9
    $region8: #{tpu_custom_call.1} parent=1 // pred_region
      %s25 = ssub.s32 128, 128
      %26 = vsyncadd [#allocation6], %s25
      %s28 = sshll.u32 [#allocation5], 4
      %s29 = int_to_ptr.vmem [resolvable:$true] %s28
      %31 = dma.hbm_to_vmem [thread:$0]  %s1, 128, %s29, [#allocation6]
    $region9: #{tpu_custom_call.1} parent=1 // pred_fallthru
      _
    // Predicated region
    $region10: #{tpu_custom_call.1} parent=1 // pred_check
      _
    $region11: #{tpu_custom_call.1} parent=1 // pred_check_branch
      %33 = sbr.rel (0) target = $region13
    $region12: #{tpu_custom_call.1} parent=1 // pred_region
      %s35 = ssub.s32 768, 768
      %36 = vsyncadd [#allocation6], %s35
      %s37 = sshll.u32 [#allocation7], 4
      %s38 = int_to_ptr.vmem [resolvable:$true] %s37
      %43 = dma.hbm_to_vmem [thread:$0]  %s2, 768, %s38, [#allocation6], 384, 384, 24
    $region13: #{tpu_custom_call.1} parent=1 // pred_fallthru
      _
    // Predicated region
    $region14: #{tpu_custom_call.1} parent=1 // pred_check
      _
    $region15: #{tpu_custom_call.1} parent=1 // pred_check_branch
      %45 = sbr.rel (0) target = $region17
    $region16: #{tpu_custom_call.1} parent=1 // pred_region
      _
    $region17: #{tpu_custom_call.1} parent=1 // pred_fallthru
      _
    // Predicated region
    $region18: #{tpu_custom_call.1} parent=1 // pred_check
      _
    $region19: #{tpu_custom_call.1} parent=1 // pred_check_branch
      %47 = sbr.rel (0) target = $region21
    $region20: #{tpu_custom_call.1} parent=1 // pred_region
      %48 = dma.done [#allocation3], 2048
    $region21: #{tpu_custom_call.1} parent=1 // pred_fallthru
      _
    // Predicated region
    $region22: #{tpu_custom_call.1} parent=1 // pred_check
      _
    $region23: #{tpu_custom_call.1} parent=1 // pred_check_branch
      %50 = sbr.rel (0) target = $region25
    $region24: #{tpu_custom_call.1} parent=1 // pred_region
      %51 = dma.done [#allocation6], 128
    $region25: #{tpu_custom_call.1} parent=1 // pred_fallthru
      _
    // Predicated region
    $region26: #{tpu_custom_call.1} parent=1 // pred_check
      _
    $region27: #{tpu_custom_call.1} parent=1 // pred_check_branch
      %53 = sbr.rel (0) target = $region29
    $region28: #{tpu_custom_call.1} parent=1 // pred_region
      %54 = dma.done [#allocation6], 768
    $region29: #{tpu_custom_call.1} parent=1 // pred_fallthru
      _
    %v55 = vld [vmem:[#allocation5] sm:$0xff]
    %v56 = vld [vmem:[#allocation7] sm:$0xff]
    %v57 = vld [vmem:[#allocation7 + $0x8] sm:$0xff]
    %v58 = vld [vmem:[#allocation7 + $0x10] sm:$0xff]
    %v59 = vld [vmem:[#allocation7 + $0x18] sm:$0x3f]
    %v60 = vld [vmem:[#allocation7 + $0x20] sm:$0x3f]
    %v61 = vld [vmem:[#allocation7 + $0x28] sm:$0x3f]
    %v62 = vld [vmem:[%s3] sm:$0x7]
    %v64 = vlaneseq
    %v65 = vshrl.u32 %v64, 7
    %v66 = vsub.s32 0, %v65
    %v67 = vrot.slane %v62, %v66
    %v68 = vlaneseq
    %v69 = vshrl.u32 %v68, 7
    %v70 = vsub.s32 1, %v69
    %v71 = vrot.slane %v62, %v70
    %v72 = vlaneseq
    %v73 = vshrl.u32 %v72, 7
    %v74 = vsub.s32 2, %v73
    %v75 = vrot.slane %v62, %v74
    %vm79 = vcmask 113664
    %v81 = vsel %vm79, %v55, 0
    %vm83 = vcmask 1045504
    %v85 = vsel %vm83, %v59, 0
    %v88 = vsel %vm83, %v60, 0
    %v91 = vsel %vm83, %v61, 0
    %93 = vmatprep.subr.mxu0 %v57
    %94 = vmatpush1.msra.mxu0 %v56
    %95 = vmatprep.subr.mxu0 %v88
    %96 = vmatpush1.msra.mxu0 %v85
    %97 = vmatprep.subr.mxu0 0.0
    %98 = vmatpush1.msra.mxu0 0.0
    %99 = vmatprep.subr.mxu0 0.0
    %100 = vmatpush1.msra.mxu0 0.0
    %101 = vmatprep.subr.mxu0 0.0
    %102 = vmatpush1.msra.mxu0 0.0
    %103 = vmatprep.subr.mxu0 0.0
    %104 = vmatpush1.msra.mxu0 0.0
    %105 = vmatprep.subr.mxu0 0.0
    %106 = vmatpush1.msra.mxu0 0.0
    %107 = vmatprep.subr.mxu0 0.0
    %108 = vmatpush1.msra.mxu0 0.0
    %109 = vmatprep.subr.mxu0 0.0
    %110 = vmatpush1.msra.mxu0 0.0
    %111 = vmatprep.subr.mxu0 0.0
    %112 = vmatpush1.msra.mxu0 0.0
    %113 = vmatprep.subr.mxu0 0.0
    %114 = vmatpush1.msra.mxu0 0.0
    %115 = vmatprep.subr.mxu0 0.0
    %116 = vmatpush1.msra.mxu0 0.0
    %117 = vmatprep.subr.mxu0 0.0
    %118 = vmatpush1.msra.mxu0 0.0
    %119 = vmatprep.subr.mxu0 0.0
    %120 = vmatpush1.msra.mxu0 0.0
    %121 = vmatprep.subr.mxu0 0.0
    %122 = vmatpush1.msra.mxu0 0.0
    %123 = vmatprep.subr.mxu0 0.0
    %124 = vmatpush1.msra.mxu0 0.0
    %125 = vmatprep.subr.mxu0 0.0
    %126 = vmatpush1.msra.mxu0 0.0
    %127 = vmatprep.subr.mxu0 0.0
    %128 = vmatpush1.msra.mxu0 0.0
    %129 = vmatprep.subr.mxu0 0.0
    %130 = vmatpush1.msra.mxu0 0.0
    %131 = vmatprep.subr.mxu0 0.0
    %132 = vmatpush1.msra.mxu0 0.0
    %133 = vmatprep.subr.mxu0 0.0
    %134 = vmatpush1.msra.mxu0 0.0
    %135 = vmatprep.subr.mxu0 0.0
    %136 = vmatpush1.msra.mxu0 0.0
    %137 = vmatprep.subr.mxu0 0.0
    %138 = vmatpush1.msra.mxu0 0.0
    %139 = vmatprep.subr.mxu0 0.0
    %140 = vmatpush1.msra.mxu0 0.0
    %141 = vmatprep.subr.mxu0 0.0
    %142 = vmatpush1.msra.mxu0 0.0
    %143 = vmatprep.subr.mxu0 0.0
    %144 = vmatpush1.msra.mxu0 0.0
    %145 = vmatprep.subr.mxu0 0.0
    %146 = vmatpush1.msra.mxu0 0.0
    %147 = vmatprep.subr.mxu0 0.0
    %148 = vmatpush1.msra.mxu0 0.0
    %149 = vmatprep.subr.mxu0 0.0
    %150 = vmatpush1.msra.mxu0 0.0
    %151 = vmatprep.subr.mxu0 0.0
    %152 = vmatpush1.msra.mxu0 0.0
    %153 = vmatprep.subr.mxu0 0.0
    %154 = vmatpush1.msra.mxu0 0.0
    %155 = vmatprep.subr.mxu0 0.0
    %156 = vmatpush1.msra.mxu0 0.0
    %157 = vmatprep.mubr.f32.mxu0 0.0
    %158 = vmatmul.mubr.f32.gmra.mrb[0].mxu0 %v81
    %v159 = vpop.f32.mrb[0].mxu0
    %v160 = vadd.f32 %v67, %v159
    %v161 = vpop.f32.mrb[0].mxu0
    %v162 = vadd.f32 %v71, %v161
    %163 = vdwg.mxu0
    %164 = vmatprep.subr.mxu0 0.0
    %165 = vmatpush1.msra.mxu0 %v58
    %166 = vmatprep.subr.mxu0 0.0
    %167 = vmatpush1.msra.mxu0 %v91
    %168 = vmatprep.subr.mxu0 0.0
    %169 = vmatpush1.msra.mxu0 0.0
    %170 = vmatprep.subr.mxu0 0.0
    %171 = vmatpush1.msra.mxu0 0.0
    %172 = vmatprep.subr.mxu0 0.0
    %173 = vmatpush1.msra.mxu0 0.0
    %174 = vmatprep.subr.mxu0 0.0
    %175 = vmatpush1.msra.mxu0 0.0
    %176 = vmatprep.subr.mxu0 0.0
    %177 = vmatpush1.msra.mxu0 0.0
    %178 = vmatprep.subr.mxu0 0.0
    %179 = vmatpush1.msra.mxu0 0.0
    %180 = vmatprep.subr.mxu0 0.0
    %181 = vmatpush1.msra.mxu0 0.0
    %182 = vmatprep.subr.mxu0 0.0
    %183 = vmatpush1.msra.mxu0 0.0
    %184 = vmatprep.subr.mxu0 0.0
    %185 = vmatpush1.msra.mxu0 0.0
    %186 = vmatprep.subr.mxu0 0.0
    %187 = vmatpush1.msra.mxu0 0.0
    %188 = vmatprep.subr.mxu0 0.0
    %189 = vmatpush1.msra.mxu0 0.0
    %190 = vmatprep.subr.mxu0 0.0
    %191 = vmatpush1.msra.mxu0 0.0
    %192 = vmatprep.subr.mxu0 0.0
    %193 = vmatpush1.msra.mxu0 0.0
    %194 = vmatprep.subr.mxu0 0.0
    %195 = vmatpush1.msra.mxu0 0.0
    %196 = vmatprep.subr.mxu0 0.0
    %197 = vmatpush1.msra.mxu0 0.0
    %198 = vmatprep.subr.mxu0 0.0
    %199 = vmatpush1.msra.mxu0 0.0
    %200 = vmatprep.subr.mxu0 0.0
    %201 = vmatpush1.msra.mxu0 0.0
    %202 = vmatprep.subr.mxu0 0.0
    %203 = vmatpush1.msra.mxu0 0.0
    %204 = vmatprep.subr.mxu0 0.0
    %205 = vmatpush1.msra.mxu0 0.0
    %206 = vmatprep.subr.mxu0 0.0
    %207 = vmatpush1.msra.mxu0 0.0
    %208 = vmatprep.subr.mxu0 0.0
    %209 = vmatpush1.msra.mxu0 0.0
    %210 = vmatprep.subr.mxu0 0.0
    %211 = vmatpush1.msra.mxu0 0.0
    %212 = vmatprep.subr.mxu0 0.0
    %213 = vmatpush1.msra.mxu0 0.0
    %214 = vmatprep.subr.mxu0 0.0
    %215 = vmatpush1.msra.mxu0 0.0
    %216 = vmatprep.subr.mxu0 0.0
    %217 = vmatpush1.msra.mxu0 0.0
    %218 = vmatprep.subr.mxu0 0.0
    %219 = vmatpush1.msra.mxu0 0.0
    %220 = vmatprep.subr.mxu0 0.0
    %221 = vmatpush1.msra.mxu0 0.0
    %222 = vmatprep.subr.mxu0 0.0
    %223 = vmatpush1.msra.mxu0 0.0
    %224 = vmatprep.subr.mxu0 0.0
    %225 = vmatpush1.msra.mxu0 0.0
    %226 = vmatprep.subr.mxu0 0.0
    %227 = vmatpush1.msra.mxu0 0.0
    %228 = vmatprep.mubr.f32.mxu0 0.0
    %229 = vmatmul.mubr.f32.gmra.mrb[0].mxu0 %v81
    %v230 = vpop.f32.mrb[0].mxu0
    %v231 = vadd.f32 %v75, %v230
    %v232 = vpop.f32.mrb[0].mxu0
    %233 = vdwg.mxu0
    %v234 = vlaneseq
    %v235 = vand.u32 %v234, 127
    %v236 = vadd.s32 %v235, 128
    %v237 = vadd.s32 %v235, 256
    %vm238 = vcmp.ge.s32.totalorder %v235, 200
    %vm239 = vcmp.ge.s32.totalorder %v236, 200
    %vm240 = vcmp.ge.s32.totalorder %v237, 200
    %v241 = vmax.f32 %v160, 0.0
    %v242 = vmax.f32 %v162, 0.0
    %v243 = vmax.f32 %v231, 0.0
    %v244 = vsel %vm238, %v241, %v160
    %v245 = vsel %vm239, %v242, %v162
    %v246 = vsel %vm240, %v243, %v231
    %v247 = vld [vmem:[#allocation2] sm:$0xff]
    %v248 = vld [vmem:[#allocation2 + $0x8] sm:$0xff]
    %v249 = vld [vmem:[#allocation2 + $0x10] sm:$0xff]
    %v250 = vld [vmem:[#allocation2 + $0x18] sm:$0xff]
    %v251 = vld [vmem:[#allocation2 + $0x20] sm:$0xff]
    %v252 = vld [vmem:[#allocation2 + $0x28] sm:$0xff]
    %v253 = vld [vmem:[#allocation2 + $0x30] sm:$0xff]
    %v254 = vld [vmem:[#allocation2 + $0x38] sm:$0xff]
    %v255 = vld [vmem:[#allocation2 + $0x40] sm:$0xff]
    %v256 = vld [vmem:[#allocation2 + $0x48] sm:$0xff]
    %v257 = vld [vmem:[#allocation2 + $0x50] sm:$0xff]
    %v258 = vld [vmem:[#allocation2 + $0x58] sm:$0xff]
    %v259 = vld [vmem:[#allocation2 + $0x60] sm:$0xff]
    %v260 = vld [vmem:[#allocation2 + $0x68] sm:$0xff]
    %v261 = vld [vmem:[#allocation2 + $0x70] sm:$0xff]
    %v262 = vld [vmem:[#allocation2 + $0x78] sm:$0xff]
    %263 = vst [vmem:[#allocation8] sm:$0xff] %v247
    %264 = vst [vmem:[#allocation8 + $0x8] sm:$0xff] %v248
    %265 = vst [vmem:[#allocation8 + $0x10] sm:$0xff] %v249
    %266 = vst [vmem:[#allocation8 + $0x18] sm:$0xff] %v250
    %267 = vst [vmem:[#allocation8 + $0x20] sm:$0xff] %v251
    %268 = vst [vmem:[#allocation8 + $0x28] sm:$0xff] %v252
    %269 = vst [vmem:[#allocation8 + $0x30] sm:$0xff] %v253
    %270 = vst [vmem:[#allocation8 + $0x38] sm:$0xff] %v254
    %271 = vst [vmem:[#allocation8 + $0x40] sm:$0xff] %v255
    %272 = vst [vmem:[#allocation8 + $0x48] sm:$0xff] %v256
    %273 = vst [vmem:[#allocation8 + $0x50] sm:$0xff] %v257
    %274 = vst [vmem:[#allocation8 + $0x58] sm:$0xff] %v258
    %275 = vst [vmem:[#allocation8 + $0x60] sm:$0xff] %v259
    %276 = vst [vmem:[#allocation8 + $0x68] sm:$0xff] %v260
    %277 = vst [vmem:[#allocation8 + $0x70] sm:$0xff] %v261
    %278 = vst [vmem:[#allocation8 + $0x78] sm:$0xff] %v262
    %279 = vst [vmem:[#allocation8 + $0x80] sm:$0xff] %v244
    %280 = vst [vmem:[#allocation8 + $0x88] sm:$0xff] %v245
    %vm281 = vcmask 588800
    %282 = vst.msk [vmem:[#allocation8 + $0x90] sm:$0xff] %vm281, %v246
    // Predicated region
    $region30: #{tpu_custom_call.1} parent=1 // pred_check
      _
    $region31: #{tpu_custom_call.1} parent=1 // pred_check_branch
      %284 = sbr.rel (0) target = $region33
    $region32: #{tpu_custom_call.1} parent=1 // pred_region
      %s286 = ssub.s32 2432, 2432
      %287 = vsyncadd [#allocation4], %s286
      %s289 = sshll.u32 [#allocation8], 4
      %s290 = int_to_ptr.vmem [resolvable:$true] %s289
      %292 = dma.vmem_to_hbm [thread:$0]  %s290, 2432, %s4, [#allocation4]
    $region33: #{tpu_custom_call.1} parent=1 // pred_fallthru
      _
    // Predicated region
    $region34: #{tpu_custom_call.1} parent=1 // pred_check
      _
    $region35: #{tpu_custom_call.1} parent=1 // pred_check_branch
      %294 = sbr.rel (0) target = $region37
    $region36: #{tpu_custom_call.1} parent=1 // pred_region
      %295 = dma.done [#allocation4], 2432
    $region37: #{tpu_custom_call.1} parent=1 // pred_fallthru
      _
    %296 = vsyncpa [#allocation3], 1
    %297 = vsyncpa [#allocation6], 1
    %298 = vsyncpa [#allocation4], 1

</llo_original>
